<compile_context>
chip_gen: v7x
topology: tpu7x:2x2x1
jax: 0.10.0
libtpu: 0.0.40
codegen_flags: <defaults>
</compile_context>

<pallas_src>
import functools

import jax
import jax.numpy as jnp
from jax import lax
from jax.experimental import pallas as pl
from jax.experimental.pallas import tpu as pltpu


def _round_up(x, m):
    return ((x + m - 1) // m) * m


def _conv_gemm_kernel(w_ref, a_ref, bias_ref, o_ref, acc_ref):
    # (Cout, Kt) @ (Kt, TN), accumulated over the K grid axis; bias fused at the end.
    k = pl.program_id(1)

    @pl.when(k == 0)
    def _():
        acc_ref[...] = jnp.zeros_like(acc_ref)

    acc_ref[...] += jnp.dot(w_ref[...], a_ref[...],
                            preferred_element_type=jnp.float32)

    @pl.when(k == pl.num_programs(1) - 1)
    def _():
        o_ref[...] = (acc_ref[...] + bias_ref[...]).astype(o_ref.dtype)


def conv2d_strided(x, w, b, *, stride=2, padding=1,
                   vmem_tile_budget=24 * 1024 * 1024):
    """NCHW conv, equivalent to nn.Conv2d(Cin, Cout, k, stride, padding).

    Lowered to a single lane-dense Pallas GEMM:
        out[Cout, B*Ho*Wo] = W[Cout, K] @ patches[K, B*Ho*Wo] + bias
    """
    B, Cin, H, W = x.shape
    Cout, _, kh, kw = w.shape
    Ho = (H + 2 * padding - kh) // stride + 1
    Wo = (W + 2 * padding - kw) // stride + 1

    cdt = x.dtype                       # compute / output dtype (no f32 upcast)
    K = Cin * kh * kw
    N = B * Ho * Wo

    # ---- N (lane) tiling ----------------------------------------------------
    Np = _round_up(N, 128)
    n_lane = Np // 128
    if n_lane <= 1:
        TN = 128
    else:
        # >= 2 grid steps along the "parallel" N axis (v7x dual-TC + pipeline
        # overlap), tiles up to 1024 lanes for DMA efficiency.
        TN = 128 * max(1, min(8, n_lane // 2))
    nn = pl.cdiv(Np, TN)
    Npad = nn * TN                      # every output column gets written

    # ---- K tiling (only when the whole-K working set would blow VMEM) -------
    itemsize = jnp.dtype(cdt).itemsize

    def _working_set(kt):
        a_blk = kt * TN * itemsize          # im2col patches block (dominant)
        w_blk = Cout * kt * itemsize        # weight block
        o_blk = Cout * TN * itemsize        # output block
        b_blk = Cout * 4                    # f32 bias
        acc = Cout * TN * 4                 # f32 accumulator scratch
        return 2 * (a_blk + w_blk + o_blk + b_blk) + acc   # double-buffered

    if _working_set(K) <= vmem_tile_budget:
        Kt, nk, Kp = K, 1, K
    else:
        Kt = 128                             # weight-block lane constraint
        while 2 * Kt < K and _working_set(2 * Kt) <= vmem_tile_budget:
            Kt *= 2
        nk = pl.cdiv(K, Kt)
        Kp = nk * Kt

    # ---- im2col (wrapper glue, minimal HBM passes) ---------------------------
    xp = jnp.pad(x, ((0, 0), (0, 0), (padding, padding), (padding, padding)))
    xp = jnp.transpose(xp, (1, 0, 2, 3))     # (Cin, B, Hp, Wp) -- one small pass
    taps = [xp[:, :,
               i:i + stride * (Ho - 1) + 1:stride,
               j:j + stride * (Wo - 1) + 1:stride]
            for i in range(kh) for j in range(kw)]           # each (Cin, B, Ho, Wo)
    a = jnp.stack(taps, axis=1)              # (Cin, kh*kw, B, Ho, Wo): K cin-major
    a = a.reshape(K, N).astype(cdt)          # contiguous reshape (free)
    a = jnp.pad(a, ((0, Kp - K), (0, Npad - N)))

    wm = jnp.pad(w.reshape(Cout, K).astype(cdt), ((0, 0), (0, Kp - K)))
    bias2 = b.reshape(Cout, 1).astype(jnp.float32)

    out = pl.pallas_call(
        _conv_gemm_kernel,
        out_shape=jax.ShapeDtypeStruct((Cout, Npad), cdt),
        grid_spec=pltpu.PrefetchScalarGridSpec(
            num_scalar_prefetch=0,
            grid=(nn, nk),                                   # reduction axis last
            in_specs=[
                pl.BlockSpec((Cout, Kt), lambda n, k: (0, k)),   # weights (small)
                pl.BlockSpec((Kt, TN), lambda n, k: (k, n)),     # im2col patches
                pl.BlockSpec((Cout, 1), lambda n, k: (0, 0)),    # bias
            ],
            out_specs=pl.BlockSpec((Cout, TN), lambda n, k: (0, n)),
            scratch_shapes=[pltpu.VMEM((Cout, TN), jnp.float32)],
        ),
        compiler_params=pltpu.CompilerParams(
            dimension_semantics=("parallel", "arbitrary"),
            vmem_limit_bytes=48 * 1024 * 1024),
    )(wm, a, bias2)

    out = out[:, :N].reshape(Cout, B, Ho, Wo)
    return jnp.transpose(out, (1, 0, 2, 3))


# --------------------------- Downsample module --------------------------------
def downsample_fwd(params, x):
    """Forward of PyTorch Downsample(dim): Conv2d(dim, dim, 3, 2, 1)."""
    return conv2d_strided(x, params['w'], params['b'], stride=2, padding=1)


def init_downsample(key, dim):
    # Matches nn.Conv2d default init (uniform +/- 1/sqrt(fan_in)).
    kw_, kb = jax.random.split(key)
    fan_in = dim * 3 * 3
    bound = 1.0 / (fan_in ** 0.5)
    w = jax.random.uniform(kw_, (dim, dim, 3, 3), jnp.float32, -bound, bound)
    b = jax.random.uniform(kb, (dim,), jnp.float32, -bound, bound)
    return {'w': w, 'b': b}


def _xla_ref(x, w, b, stride=2, padding=1):
    dim = w.shape[0]
    return lax.conv_general_dilated(
        x, w, window_strides=(stride, stride),
        padding=((padding, padding), (padding, padding)),
        dimension_numbers=('NCHW', 'OIHW', 'NCHW')) + b.reshape(1, dim, 1, 1)


# ------------------------------------------------------------------------------
if __name__ == "__main__":
    key = jax.random.PRNGKey(0)
    pkey, xkey, pkey2, xkey2 = jax.random.split(key, 4)

    # -- main shape (module spec): B=2, dim=16, 16x16 ------------------------
    B, dim, H, W = 2, 16, 16, 16
    params = init_downsample(pkey, dim)
    x = jax.random.normal(xkey, (B, dim, H, W), jnp.float32)

    out = jax.jit(downsample_fwd)(params, x)
    jax.block_until_ready(out)
    assert out.shape == (B, dim, H // 2, W // 2), out.shape
    err = float(jnp.max(jnp.abs(out - _xla_ref(x, params['w'], params['b']))))
    assert err < 5e-2, f"max abs err {err}"

    # -- odd spatial size: exercises N padding + multi-step "parallel" N grid --
    B2, dim2, H2, W2 = 2, 8, 30, 30
    params2 = init_downsample(pkey2, dim2)
    x2 = jax.random.normal(xkey2, (B2, dim2, H2, W2), jnp.float32)
    out2 = jax.jit(downsample_fwd)(params2, x2)
    jax.block_until_ready(out2)
    assert out2.shape == (B2, dim2, 15, 15), out2.shape
    err2 = float(jnp.max(jnp.abs(out2 - _xla_ref(x2, params2['w'], params2['b']))))
    assert err2 < 5e-2, f"max abs err {err2}"

    # -- tiny VMEM budget: exercises the K-reduction accumulator path ---------
    out3 = jax.jit(functools.partial(
        conv2d_strided, stride=2, padding=1,
        vmem_tile_budget=64 * 1024))(x, params['w'], params['b'])
    jax.block_until_ready(out3)
    err3 = float(jnp.max(jnp.abs(out3 - _xla_ref(x, params['w'], params['b']))))
    assert err3 < 5e-2, f"max abs err {err3}"

    print("KERNEL_OK")
</pallas_src>

<mosaic_0001>
module attributes {stable_mosaic.version = 11 : i64} {
  func.func @_conv_gemm_kernel(%arg0: i32, %arg1: i32, %arg2: memref<16x144xf32, #tpu.memory_space<vmem>>, %arg3: memref<144x128xf32, #tpu.memory_space<vmem>>, %arg4: memref<16x1xf32, #tpu.memory_space<vmem>>, %arg5: memref<16x128xf32, #tpu.memory_space<vmem>>, %arg6: memref<16x128xf32, #tpu.memory_space<vmem>>) attributes {dimension_semantics = [#tpu.dimension_semantics<parallel>, #tpu.dimension_semantics<arbitrary>], iteration_bounds = array<i64: 1, 1>, scalar_prefetch = 0 : i64, scratch_operands = 1 : i64, tpu.core_type = #tpu.core_type<tc>, window_params = [{transform_indices = @transform_0, window_bounds = array<i64: 16, 144>}, {transform_indices = @transform_1, window_bounds = array<i64: 144, 128>}, {pipeline_mode = #tpu.pipeline_mode<synchronous>, transform_indices = @transform_2, window_bounds = array<i64: 16, 1>}, {transform_indices = @transform_3, window_bounds = array<i64: 16, 128>}]} {
    %c0_i32 = arith.constant 0 : i32
    %0 = arith.cmpi eq, %arg1, %c0_i32 : i32
    %1 = arith.extui %0 : i1 to i32
    %c0_i32_0 = arith.constant 0 : i32
    %2 = arith.cmpi ne, %1, %c0_i32_0 : i32
    scf.if %2 {
      %cst_10 = arith.constant 0.000000e+00 : f32
      %12 = vector.broadcast %cst_10 : f32 to vector<16x128xf32>
      %c0_11 = arith.constant 0 : index
      %c0_12 = arith.constant 0 : index
      %13 = vector.load %arg6[%c0_11, %c0_12] : memref<16x128xf32, #tpu.memory_space<vmem>>, vector<16x128xf32>
      tpu.vector_store %arg6[%c0_11, %c0_12], %12 {strides = array<i32>} : memref<16x128xf32, #tpu.memory_space<vmem>>, vector<16x128xf32>,
    } else {
    }
    %c0 = arith.constant 0 : index
    %c0_1 = arith.constant 0 : index
    %3 = vector.load %arg6[%c0, %c0_1] : memref<16x128xf32, #tpu.memory_space<vmem>>, vector<16x128xf32>
    %c0_2 = arith.constant 0 : index
    %c0_3 = arith.constant 0 : index
    %4 = vector.load %arg2[%c0_2, %c0_3] : memref<16x144xf32, #tpu.memory_space<vmem>>, vector<16x144xf32>
    %c0_4 = arith.constant 0 : index
    %c0_5 = arith.constant 0 : index
    %5 = vector.load %arg3[%c0_4, %c0_5] : memref<144x128xf32, #tpu.memory_space<vmem>>, vector<144x128xf32>
    %cst = arith.constant dense<0.000000e+00> : vector<16x128xf32>
    %6 = tpu.matmul %4, %5, %cst {dimension_numbers = #tpu.dot_dimension_numbers<[1], [0], [0], [1], [0, 0, 1, 1], [], []>} : vector<16x144xf32>, vector<144x128xf32>, vector<16x128xf32> -> vector<16x128xf32>
    %7 = arith.addf %3, %6 : vector<16x128xf32>
    %c0_6 = arith.constant 0 : index
    %c0_7 = arith.constant 0 : index
    %8 = vector.load %arg6[%c0_6, %c0_7] : memref<16x128xf32, #tpu.memory_space<vmem>>, vector<16x128xf32>
    tpu.vector_store %arg6[%c0_6, %c0_7], %7 {strides = array<i32>} : memref<16x128xf32, #tpu.memory_space<vmem>>, vector<16x128xf32>,
    %c0_i32_8 = arith.constant 0 : i32
    %9 = arith.cmpi eq, %arg1, %c0_i32_8 : i32
    %10 = arith.extui %9 : i1 to i32
    %c0_i32_9 = arith.constant 0 : i32
    %11 = arith.cmpi ne, %10, %c0_i32_9 : i32
    scf.if %11 {
      %c0_10 = arith.constant 0 : index
      %c0_11 = arith.constant 0 : index
      %12 = vector.load %arg6[%c0_10, %c0_11] : memref<16x128xf32, #tpu.memory_space<vmem>>, vector<16x128xf32>
      %c0_12 = arith.constant 0 : index
      %c0_13 = arith.constant 0 : index
      %13 = vector.load %arg4[%c0_12, %c0_13] : memref<16x1xf32, #tpu.memory_space<vmem>>, vector<16x1xf32>
      %14 = vector.broadcast %13 : vector<16x1xf32> to vector<16x128xf32>
      %15 = arith.addf %12, %14 : vector<16x128xf32>
      %c0_14 = arith.constant 0 : index
      %c0_15 = arith.constant 0 : index
      %16 = vector.load %arg5[%c0_14, %c0_15] : memref<16x128xf32, #tpu.memory_space<vmem>>, vector<16x128xf32>
      tpu.vector_store %arg5[%c0_14, %c0_15], %15 {strides = array<i32>} : memref<16x128xf32, #tpu.memory_space<vmem>>, vector<16x128xf32>,
    } else {
    }
    return
  }
  func.func @transform_0(%arg0: i32, %arg1: i32) -> (i32, i32) {
    %c0_i32 = arith.constant 0 : i32
    %c0_i32_0 = arith.constant 0 : i32
    return %c0_i32, %arg1 : i32, i32
  }
  func.func @transform_1(%arg0: i32, %arg1: i32) -> (i32, i32) {
    %c0_i32 = arith.constant 0 : i32
    return %arg1, %arg0 : i32, i32
  }
  func.func @transform_2(%arg0: i32, %arg1: i32) -> (i32, i32) {
    %c0_i32 = arith.constant 0 : i32
    %c0_i32_0 = arith.constant 0 : i32
    %c0_i32_1 = arith.constant 0 : i32
    return %c0_i32, %c0_i32_0 : i32, i32
  }
  func.func @transform_3(%arg0: i32, %arg1: i32) -> (i32, i32) {
    %c0_i32 = arith.constant 0 : i32
    %c0_i32_0 = arith.constant 0 : i32
    return %c0_i32, %arg0 : i32, i32
  }
}

</mosaic_0001>

<llo_original>
// kernel: downsample_fwd.1
$region0: #{downsample_fwd.1}
  #allocation0 [shape = 'u32[]', space=smem, size = 0x4, offset = 0x4, fixed_abs, tag = 'smem constant byte address 0x4 - core index']
  #allocation1 [shape = 'u32[144,128]{1,0:T(1,128)}', space=vmem, size = 0x12000, scoped, tag = 'internal scratch']
  #allocation2 [shape = 'f32[16,128]{1,0:T(8,128)}', space=vmem, size = 0x2000, scoped, tag = 'scratch operand']
  %s0 = inlined_call_operand.vmem [shape: f32[16,144], index: 0, kind: input, shape index: {}]
  %s1 = inlined_call_operand.vmem [shape: f32[144,128], index: 1, kind: input, shape index: {}]
  %s2 = inlined_call_operand.vmem [shape: f32[16,1], index: 2, kind: input, shape index: {}]
  %s3 = inlined_call_operand.vmem [shape: f32[16,128], index: 3, kind: output, shape index: {}]
  %s4 = sld [smem:[#allocation0]]
  $region30: #{downsample_fwd.1} parent=0
    _
  %s6 = ssub.s32 1, %s4
  %s7 = scalar_select 0, %s6, %s4
  // Predicated region
  $region2: #{downsample_fwd.1} parent=0 // pred_check
    _
  $region3: #{downsample_fwd.1} parent=0 // pred_check_branch
    %9 = sbr.rel (0) target = $region5
  $region4: #{downsample_fwd.1} parent=0 // pred_region
    _
  $region5: #{downsample_fwd.1} parent=0 // pred_fallthru
    _
  // Predicated region
  $region6: #{downsample_fwd.1} parent=0 // pred_check
    _
  $region7: #{downsample_fwd.1} parent=0 // pred_check_branch
    %11 = sbr.rel (0) target = $region9
  $region8: #{downsample_fwd.1} parent=0 // pred_region
    _
  $region9: #{downsample_fwd.1} parent=0 // pred_fallthru
    _
  // Predicated region
  $region10: #{downsample_fwd.1} parent=0 // pred_check
    _
  $region11: #{downsample_fwd.1} parent=0 // pred_check_branch
    %13 = sbr.rel (0) target = $region13
  $region12: #{downsample_fwd.1} parent=0 // pred_region
    _
  $region13: #{downsample_fwd.1} parent=0 // pred_fallthru
    _
  %p14 = scmp.eq.s32.totalorder 0, 0
  // Predicated region
  $region14: #{downsample_fwd.1} parent=0 // pred_check
    %p15 = pneg %p14
  $region15: #{downsample_fwd.1} parent=0 // pred_check_branch
    %17 = sbr.rel (%p15) target = $region17
  $region16: #{downsample_fwd.1} parent=0 // pred_region
    %18 = vst [vmem:[#allocation2] sm:$0xff] 0.0
    %19 = vst [vmem:[#allocation2 + $0x8] sm:$0xff] 0.0
  $region17: #{downsample_fwd.1} parent=0 // pred_fallthru
    _
  %v20 = vld [vmem:[#allocation2] sm:$0xff]
  %v21 = vld [vmem:[#allocation2 + $0x8] sm:$0xff]
  %v22 = vld [vmem:[%s0] sm:$0xff]
  %v23 = vld [vmem:[%s0 + $0x8] sm:$0xff]
  %v24 = vld [vmem:[%s0 + $0x10] sm:$0xff]
  %v25 = vld [vmem:[%s0 + $0x18] sm:$0xff]
  %v26 = vld [vmem:[%s1] sm:$0xff]
  %v27 = vld [vmem:[%s1 + $0x8] sm:$0xff]
  %v28 = vld [vmem:[%s1 + $0x10] sm:$0xff]
  %v29 = vld [vmem:[%s1 + $0x18] sm:$0xff]
  %v30 = vld [vmem:[%s1 + $0x20] sm:$0xff]
  %v31 = vld [vmem:[%s1 + $0x28] sm:$0xff]
  %v32 = vld [vmem:[%s1 + $0x30] sm:$0xff]
  %v33 = vld [vmem:[%s1 + $0x38] sm:$0xff]
  %v34 = vld [vmem:[%s1 + $0x40] sm:$0xff]
  %v35 = vld [vmem:[%s1 + $0x48] sm:$0xff]
  %v36 = vld [vmem:[%s1 + $0x50] sm:$0xff]
  %v37 = vld [vmem:[%s1 + $0x58] sm:$0xff]
  %v38 = vld [vmem:[%s1 + $0x60] sm:$0xff]
  %v39 = vld [vmem:[%s1 + $0x68] sm:$0xff]
  %v40 = vld [vmem:[%s1 + $0x70] sm:$0xff]
  %v41 = vld [vmem:[%s1 + $0x78] sm:$0xff]
  %v42 = vld [vmem:[%s1 + $0x80] sm:$0xff]
  %v43 = vld [vmem:[%s1 + $0x88] sm:$0xff]
  %vm44 = vcmask 130048
  %v46 = vsel %vm44, %v23, 0
  %v49 = vsel %vm44, %v25, 0
  %51 = vmatprep.subr.mxu0 0.0
  %52 = vmatpush1.msra.mxu0 %v26
  %53 = vmatprep.subr.mxu0 0.0
  %54 = vmatpush1.msra.mxu0 %v27
  %55 = vmatprep.subr.mxu0 0.0
  %56 = vmatpush1.msra.mxu0 %v28
  %57 = vmatprep.subr.mxu0 0.0
  %58 = vmatpush1.msra.mxu0 %v29
  %59 = vmatprep.subr.mxu0 0.0
  %60 = vmatpush1.msra.mxu0 %v30
  %61 = vmatprep.subr.mxu0 0.0
  %62 = vmatpush1.msra.mxu0 %v31
  %63 = vmatprep.subr.mxu0 0.0
  %64 = vmatpush1.msra.mxu0 %v32
  %65 = vmatprep.subr.mxu0 0.0
  %66 = vmatpush1.msra.mxu0 %v33
  %67 = vmatprep.subr.mxu0 0.0
  %68 = vmatpush1.msra.mxu0 %v34
  %69 = vmatprep.subr.mxu0 0.0
  %70 = vmatpush1.msra.mxu0 %v35
  %71 = vmatprep.subr.mxu0 0.0
  %72 = vmatpush1.msra.mxu0 %v36
  %73 = vmatprep.subr.mxu0 0.0
  %74 = vmatpush1.msra.mxu0 %v37
  %75 = vmatprep.subr.mxu0 0.0
  %76 = vmatpush1.msra.mxu0 %v38
  %77 = vmatprep.subr.mxu0 0.0
  %78 = vmatpush1.msra.mxu0 %v39
  %79 = vmatprep.subr.mxu0 0.0
  %80 = vmatpush1.msra.mxu0 %v40
  %81 = vmatprep.subr.mxu0 0.0
  %82 = vmatpush1.msra.mxu0 %v41
  %83 = vmatprep.subr.mxu0 0.0
  %84 = vmatpush1.msra.mxu0 %v42
  %85 = vmatprep.subr.mxu0 0.0
  %86 = vmatpush1.msra.mxu0 %v43
  %87 = vmatprep.subr.mxu0 0.0
  %88 = vmatpush1.msra.mxu0 0.0
  %89 = vmatprep.subr.mxu0 0.0
  %90 = vmatpush1.msra.mxu0 0.0
  %91 = vmatprep.subr.mxu0 0.0
  %92 = vmatpush1.msra.mxu0 0.0
  %93 = vmatprep.subr.mxu0 0.0
  %94 = vmatpush1.msra.mxu0 0.0
  %95 = vmatprep.subr.mxu0 0.0
  %96 = vmatpush1.msra.mxu0 0.0
  %97 = vmatprep.subr.mxu0 0.0
  %98 = vmatpush1.msra.mxu0 0.0
  %99 = vmatprep.subr.mxu0 0.0
  %100 = vmatpush1.msra.mxu0 0.0
  %101 = vmatprep.subr.mxu0 0.0
  %102 = vmatpush1.msra.mxu0 0.0
  %103 = vmatprep.subr.mxu0 0.0
  %104 = vmatpush1.msra.mxu0 0.0
  %105 = vmatprep.subr.mxu0 0.0
  %106 = vmatpush1.msra.mxu0 0.0
  %107 = vmatprep.subr.mxu0 0.0
  %108 = vmatpush1.msra.mxu0 0.0
  %109 = vmatprep.subr.mxu0 0.0
  %110 = vmatpush1.msra.mxu0 0.0
  %111 = vmatprep.subr.mxu0 0.0
  %112 = vmatpush1.msra.mxu0 0.0
  %113 = vmatprep.subr.mxu0 0.0
  %114 = vmatpush1.msra.mxu0 0.0
  %115 = vmatprep.mubr.f32.mxu0 %v46
  %116 = vmatmul.mubr.f32.gmra.mrb[0].mxu0 %v22
  %v117 = vpop.f32.mrb[0].mxu0
  %v118 = vadd.f32 0.0, %v117
  %v119 = vpop.f32.mrb[0].mxu0
  %120 = vmatprep.mubr.f32.mxu0 %v49
  %121 = vmatmul.mubr.f32.gmra.mrb[0].mxu0 %v24
  %v122 = vpop.f32.mrb[0].mxu0
  %v123 = vadd.f32 0.0, %v122
  %v124 = vpop.f32.mrb[0].mxu0
  %125 = vdwg.mxu0
  %v126 = vadd.f32 %v20, %v118
  %v127 = vadd.f32 %v21, %v123
  %128 = vst [vmem:[#allocation2] sm:$0xff] %v126
  %129 = vst [vmem:[#allocation2 + $0x8] sm:$0xff] %v127
  // Predicated region
  $region18: #{downsample_fwd.1} parent=0 // pred_check
    %p130 = pneg %p14
  $region19: #{downsample_fwd.1} parent=0 // pred_check_branch
    %132 = sbr.rel (%p130) target = $region21
  $region20: #{downsample_fwd.1} parent=0 // pred_region
    %v133 = vld [vmem:[#allocation2] sm:$0xff]
    %v134 = vld [vmem:[#allocation2 + $0x8] sm:$0xff]
    %v135 = vld [vmem:[%s2] sm:$0xff]
    %v136 = vld [vmem:[%s2 + $0x8] sm:$0xff]
    %138 = vset.pattern.permute.xlu0 0
    %139 = vperm.xlu0 %138, %v135
    %v140 = vpop.permute.xlu0 %139
    %143 = vset.pattern.permute.xlu0 0
    %144 = vperm.xlu0 %143, %v136
    %v145 = vpop.permute.xlu0 %144
    %v147 = vadd.f32 %v133, %v140
    %v148 = vadd.f32 %v134, %v145
    %149 = vst [vmem:[%s3] sm:$0xff] %v147
    %150 = vst [vmem:[%s3 + $0x8] sm:$0xff] %v148
  $region21: #{downsample_fwd.1} parent=0 // pred_fallthru
    _
  // Predicated region
  $region22: #{downsample_fwd.1} parent=0 // pred_check
    _
  $region23: #{downsample_fwd.1} parent=0 // pred_check_branch
    %152 = sbr.rel (0) target = $region25
  $region24: #{downsample_fwd.1} parent=0 // pred_region
    _
  $region25: #{downsample_fwd.1} parent=0 // pred_fallthru
    _
  // Predicated region
  $region26: #{downsample_fwd.1} parent=0 // pred_check
    _
  $region27: #{downsample_fwd.1} parent=0 // pred_check_branch
    %154 = sbr.rel (0) target = $region29
  $region28: #{downsample_fwd.1} parent=0 // pred_region
    _
  $region29: #{downsample_fwd.1} parent=0 // pred_fallthru
    _

</llo_original>
